<compile_context>
chip_gen: v6e
topology: v6e:2x2x1
jax: 0.10.0
libtpu: 0.0.40
codegen_flags: <defaults>
</compile_context>

<pallas_src>
import functools

import jax
import jax.numpy as jnp
from jax.experimental import pallas as pl
from jax.experimental.pallas import tpu as pltpu

KERNEL = 3  # kernel_size == stride for MaxPool2d(kernel_size=3)


def _maxpool_kernel(x_ref, o_ref, *, W, Ho, chunk_w):
    """Pools BC flattened (H*W) planes into a (BC, Ho*chunk_w) row-chunk layout.

    o[:, i*chunk_w + w] == max(x[3i:3i+3, w:w+3]) for every column w; the
    wrapper keeps only the window-origin columns w in {0, 3, ..., 3*(Wo-1)}.
    All ops are contiguous static slices + jnp.maximum (pure VPU / XLU).
    """
    x = x_ref[...]                                   # (BC, H*W), input dtype
    L = x.shape[1]
    K = KERNEL

    # ---- H-direction window max: rows h, h+1, h+2 are lane offsets 0, W, 2W ----
    ch = L - (K - 1) * W
    c = x[:, 0:ch]
    for dk in range(1, K):
        c = jnp.maximum(c, x[:, dk * W: dk * W + ch])
    # c[:, h*W + w] == max(x[h:h+3, w]) for h <= H-3

    # ---- W-direction window max via shifted static lane slices ----
    cw = ch - (K - 1)
    m = c[:, 0:cw]
    for dj in range(1, K):
        m = jnp.maximum(m, c[:, dj:dj + cw])
    # m[:, h*W + w] == full 3x3 window max at (h, w) whenever w <= W-3

    # ---- one contiguous chunk per output row (input rows 3i..3i+2) ----
    for i in range(Ho):
        o_ref[:, i * chunk_w:(i + 1) * chunk_w] = \
            m[:, K * i * W: K * i * W + chunk_w]


def damon_forward(x, *, target_block_bytes=512 * 1024):
    """MaxPool2d(kernel_size=3, ceil_mode=False) on an NCHW tensor."""
    N, C, H, W = x.shape
    assert H >= KERNEL and W >= KERNEL, "input smaller than pooling window"
    Ho = (H - KERNEL) // KERNEL + 1      # floor mode (ceil_mode=False)
    Wo = (W - KERNEL) // KERNEL + 1
    P = N * C
    L = H * W
    CW = W - (KERNEL - 1)                # per-output-row chunk width in kernel output
    OUTW = Ho * CW

    itemsize = jnp.dtype(x.dtype).itemsize
    plane_bytes = L * itemsize

    # ---- planes pooled per grid step (amortize per-step pipeline overhead) ----
    bc = max(1, target_block_bytes // plane_bytes)
    if bc >= P:
        BC, G = P, 1                     # block == full array -> no alignment issue
    else:
        BC = max(8, (bc // 8) * 8)       # keep the block's sublane dim 8-aligned
        G = pl.cdiv(P, BC)
    P_pad = G * BC

    xr = x.reshape(P, L)                 # zero-copy view: one plane per row
    if P_pad != P:
        xr = jnp.pad(xr, ((0, P_pad - P), (0, 0)))

    kernel = functools.partial(_maxpool_kernel, W=W, Ho=Ho, chunk_w=CW)

    cost = pl.CostEstimate(
        flops=int(4 * P_pad * L),        # ~4 max/compare ops per input element
        transcendentals=0,
        bytes_accessed=int((P_pad * L + P_pad * OUTW) * itemsize),
    )

    y = pl.pallas_call(
        kernel,
        out_shape=jax.ShapeDtypeStruct((P_pad, OUTW), x.dtype),
        grid=(G,),
        in_specs=[pl.BlockSpec((BC, L), lambda n: (n, 0))],     # BC planes / step
        out_specs=pl.BlockSpec((BC, OUTW), lambda n: (n, 0)),
        compiler_params=pltpu.CompilerParams(
            dimension_semantics=("parallel",)
        ),
        cost_estimate=cost,
    )(xr)

    # Final decimation: keep the window-origin columns (0, 3, ...) of each
    # 14-lane chunk.  Pure layout plumbing on an array much smaller than the
    # input; all pooling arithmetic already happened in the kernel.
    y = y[:P].reshape(N, C, Ho, CW)
    return y[..., 0: KERNEL * (Wo - 1) + 1: KERNEL]


def _reference_maxpool(x):
    # Pure-JAX reference: VALID max pooling, window=stride=3 (floor mode).
    return jax.lax.reduce_window(
        x, -jnp.inf, jax.lax.max,
        window_dimensions=(1, 1, KERNEL, KERNEL),
        window_strides=(1, 1, KERNEL, KERNEL),
        padding="VALID",
    )


if __name__ == "__main__":
    key = jax.random.PRNGKey(0)
    # Small NCHW input consistent with the module's forward; 16x16 exercises the
    # floor/crop behavior since 16 % 3 != 0.
    x = jax.random.normal(key, (2, 4, 16, 16), dtype=jnp.float32)

    out = jax.block_until_ready(damon_forward(x))

    ref = _reference_maxpool(x)
    assert out.shape == (2, 4, 5, 5), out.shape
    assert jnp.allclose(out, ref, atol=1e-6, rtol=1e-6), "mismatch vs reference"

    print("KERNEL_OK")
</pallas_src>

<mosaic_0001>
module attributes {stable_mosaic.version = 11 : i64} {
  func.func @_maxpool_kernel(%arg0: i32, %arg1: memref<8x256xf32, #tpu.memory_space<vmem>>, %arg2: memref<8x70xf32, #tpu.memory_space<vmem>>) attributes {dimension_semantics = [#tpu.dimension_semantics<parallel>], iteration_bounds = array<i64: 1>, scalar_prefetch = 0 : i64, scratch_operands = 0 : i64, tpu.core_type = #tpu.core_type<tc>, window_params = [{transform_indices = @transform_0, window_bounds = array<i64: 8, 256>}, {transform_indices = @transform_1, window_bounds = array<i64: 8, 70>}]} {
    %c0 = arith.constant 0 : index
    %c0_0 = arith.constant 0 : index
    %0 = vector.load %arg1[%c0, %c0_0] : memref<8x256xf32, #tpu.memory_space<vmem>>, vector<8x256xf32>
    %1 = vector.extract_strided_slice %0 {offsets = [0, 0], sizes = [8, 224], strides = [1, 1]} : vector<8x256xf32> to vector<8x224xf32>
    %2 = vector.extract_strided_slice %0 {offsets = [0, 16], sizes = [8, 224], strides = [1, 1]} : vector<8x256xf32> to vector<8x224xf32>
    %3 = arith.maximumf %1, %2 : vector<8x224xf32>
    %4 = vector.extract_strided_slice %0 {offsets = [0, 32], sizes = [8, 224], strides = [1, 1]} : vector<8x256xf32> to vector<8x224xf32>
    %5 = arith.maximumf %3, %4 : vector<8x224xf32>
    %6 = vector.extract_strided_slice %5 {offsets = [0, 0], sizes = [8, 222], strides = [1, 1]} : vector<8x224xf32> to vector<8x222xf32>
    %7 = vector.extract_strided_slice %5 {offsets = [0, 1], sizes = [8, 222], strides = [1, 1]} : vector<8x224xf32> to vector<8x222xf32>
    %8 = arith.maximumf %6, %7 : vector<8x222xf32>
    %9 = vector.extract_strided_slice %5 {offsets = [0, 2], sizes = [8, 222], strides = [1, 1]} : vector<8x224xf32> to vector<8x222xf32>
    %10 = arith.maximumf %8, %9 : vector<8x222xf32>
    %11 = vector.extract_strided_slice %10 {offsets = [0, 0], sizes = [8, 14], strides = [1, 1]} : vector<8x222xf32> to vector<8x14xf32>
    %c0_1 = arith.constant 0 : index
    %c0_2 = arith.constant 0 : index
    %12 = vector.load %arg2[%c0_1, %c0_2] : memref<8x70xf32, #tpu.memory_space<vmem>>, vector<8x14xf32>
    tpu.vector_store %arg2[%c0_1, %c0_2], %11 {strides = array<i32>} : memref<8x70xf32, #tpu.memory_space<vmem>>, vector<8x14xf32>,
    %13 = vector.extract_strided_slice %10 {offsets = [0, 48], sizes = [8, 14], strides = [1, 1]} : vector<8x222xf32> to vector<8x14xf32>
    %c0_3 = arith.constant 0 : index
    %c14 = arith.constant 14 : index
    %14 = vector.load %arg2[%c0_3, %c14] : memref<8x70xf32, #tpu.memory_space<vmem>>, vector<8x14xf32>
    tpu.vector_store %arg2[%c0_3, %c14], %13 {strides = array<i32>} : memref<8x70xf32, #tpu.memory_space<vmem>>, vector<8x14xf32>,
    %15 = vector.extract_strided_slice %10 {offsets = [0, 96], sizes = [8, 14], strides = [1, 1]} : vector<8x222xf32> to vector<8x14xf32>
    %c0_4 = arith.constant 0 : index
    %c28 = arith.constant 28 : index
    %16 = vector.load %arg2[%c0_4, %c28] : memref<8x70xf32, #tpu.memory_space<vmem>>, vector<8x14xf32>
    tpu.vector_store %arg2[%c0_4, %c28], %15 {strides = array<i32>} : memref<8x70xf32, #tpu.memory_space<vmem>>, vector<8x14xf32>,
    %17 = vector.extract_strided_slice %10 {offsets = [0, 144], sizes = [8, 14], strides = [1, 1]} : vector<8x222xf32> to vector<8x14xf32>
    %c0_5 = arith.constant 0 : index
    %c42 = arith.constant 42 : index
    %18 = vector.load %arg2[%c0_5, %c42] : memref<8x70xf32, #tpu.memory_space<vmem>>, vector<8x14xf32>
    tpu.vector_store %arg2[%c0_5, %c42], %17 {strides = array<i32>} : memref<8x70xf32, #tpu.memory_space<vmem>>, vector<8x14xf32>,
    %19 = vector.extract_strided_slice %10 {offsets = [0, 192], sizes = [8, 14], strides = [1, 1]} : vector<8x222xf32> to vector<8x14xf32>
    %c0_6 = arith.constant 0 : index
    %c56 = arith.constant 56 : index
    %20 = vector.load %arg2[%c0_6, %c56] : memref<8x70xf32, #tpu.memory_space<vmem>>, vector<8x14xf32>
    tpu.vector_store %arg2[%c0_6, %c56], %19 {strides = array<i32>} : memref<8x70xf32, #tpu.memory_space<vmem>>, vector<8x14xf32>,
    return
  }
  func.func @transform_0(%arg0: i32) -> (i32, i32) {
    %c0_i32 = arith.constant 0 : i32
    %c0_i32_0 = arith.constant 0 : i32
    return %arg0, %c0_i32 : i32, i32
  }
  func.func @transform_1(%arg0: i32) -> (i32, i32) {
    %c0_i32 = arith.constant 0 : i32
    %c0_i32_0 = arith.constant 0 : i32
    return %arg0, %c0_i32 : i32, i32
  }
}

</mosaic_0001>

<llo_original>
// kernel: tpu_custom_call.1
$region0: #{tpu_custom_call.1}
  #allocation0 [shape = 'u32[]', space=smem, size = 0x4, offset = 0x4, fixed_abs, tag = 'smem constant byte address 0x4 - core index']
  #allocation1 [shape = 'u32[144,128]{1,0:T(1,128)}', space=vmem, size = 0x12000, scoped, tag = 'internal scratch']
  %s0 = inlined_call_operand.hbm [shape: f32[8,256], index: 0, kind: input, shape index: {}]
  %s1 = inlined_call_operand.hbm [shape: f32[8,70], index: 1, kind: output, shape index: {}]
  %s2 = sld [smem:[#allocation0]]
  $region18: #{tpu_custom_call.1} parent=0
    _
  %s4 = ssub.s32 1, %s2
  %s5 = scalar_select 0, %s4, %s2
  $region1: #{tpu_custom_call.1} parent=0
    #allocation2 [shape = 'u8[8192]{0}', space=vmem, size = 0x2000, scoped, tag = 'input window, operand 0, single buffered']
    #allocation3 [shape = 's32[1]{0}', space=sflag, size = 0x4, scoped, tag = 'scoped memory for tpu_custom_call.1']
    #allocation4 [shape = 's32[1]{0}', space=sflag, size = 0x4, scoped, tag = 'scoped memory for tpu_custom_call.1']
    #allocation5 [shape = 'u8[4096]{0}', space=vmem, size = 0x1000, scoped, tag = 'output window, operand 0, single buffered']
    %6 = vsyncpa [#allocation3], 0
    %7 = vsyncpa [#allocation4], 0
    // Predicated region
    $region2: #{tpu_custom_call.1} parent=1 // pred_check
      _
    $region3: #{tpu_custom_call.1} parent=1 // pred_check_branch
      %9 = sbr.rel (0) target = $region5
    $region4: #{tpu_custom_call.1} parent=1 // pred_region
      %s11 = ssub.s32 256, 256
      %12 = vsyncadd [#allocation3], %s11
      %s14 = sshll.u32 [#allocation2], 4
      %s15 = int_to_ptr.vmem [resolvable:$true] %s14
      %17 = dma.hbm_to_vmem [thread:$0]  %s0, 256, %s15, [#allocation3]
    $region5: #{tpu_custom_call.1} parent=1 // pred_fallthru
      _
    // Predicated region
    $region6: #{tpu_custom_call.1} parent=1 // pred_check
      _
    $region7: #{tpu_custom_call.1} parent=1 // pred_check_branch
      %19 = sbr.rel (0) target = $region9
    $region8: #{tpu_custom_call.1} parent=1 // pred_region
      %20 = dma.done [#allocation3], 256
    $region9: #{tpu_custom_call.1} parent=1 // pred_fallthru
      _
    %v21 = vld [vmem:[#allocation2] sm:$0xff]
    %v22 = vld [vmem:[#allocation2 + $0x8] sm:$0xff]
    %25 = vrot.lane.b32.xlu0 %v21, 112
    %v26 = vpop.permute.xlu0 %25
    %27 = vrot.lane.b32.xlu0 %v22, 112
    %v28 = vpop.permute.xlu0 %27
    %vm29 = vcmask 916480
    %v30 = vsel %vm29, %v26, %v28
    %v33 = vmax.f32 %v21, %v30
    %v34 = vmax.f32 %v22, %v28
    %35 = vrot.lane.b32.xlu0 %v21, 96
    %v36 = vpop.permute.xlu0 %35
    %37 = vrot.lane.b32.xlu0 %v22, 96
    %v38 = vpop.permute.xlu0 %37
    %vm39 = vcmask 785408
    %v40 = vsel %vm39, %v36, %v38
    %v43 = vmax.f32 %v33, %v40
    %v44 = vmax.f32 %v34, %v38
    %47 = vrot.lane.b32.xlu0 %v43, 127
    %v48 = vpop.permute.xlu0 %47
    %49 = vrot.lane.b32.xlu0 %v44, 127
    %v50 = vpop.permute.xlu0 %49
    %vm51 = vcmask 1039360
    %v52 = vsel %vm51, %v48, %v50
    %v55 = vmax.f32 %v43, %v52
    %v56 = vmax.f32 %v44, %v50
    %57 = vrot.lane.b32.xlu0 %v43, 126
    %v58 = vpop.permute.xlu0 %57
    %59 = vrot.lane.b32.xlu0 %v44, 126
    %v60 = vpop.permute.xlu0 %59
    %vm61 = vcmask 1031168
    %v62 = vsel %vm61, %v58, %v60
    %v65 = vmax.f32 %v55, %v62
    %v66 = vmax.f32 %v56, %v60
    %vm67 = vcmask 113664
    %68 = vst.msk [vmem:[#allocation5] sm:$0xff] %vm67, %v65
    %70 = vrot.lane.b32.xlu0 %v65, 94
    %v71 = vpop.permute.xlu0 %70
    %vm73 = vcmask 228464
    %74 = vst.msk [vmem:[#allocation5] sm:$0xff] %vm73, %v71
    %75 = vrot.lane.b32.xlu0 %v65, 60
    %v76 = vpop.permute.xlu0 %75
    %vm78 = vcmask 343264
    %79 = vst.msk [vmem:[#allocation5] sm:$0xff] %vm78, %v76
    %81 = vrot.lane.b32.xlu0 %v66, 26
    %v82 = vpop.permute.xlu0 %81
    %vm84 = vcmask 458064
    %85 = vst.msk [vmem:[#allocation5] sm:$0xff] %vm84, %v82
    %86 = vrot.lane.b32.xlu0 %v66, 120
    %v87 = vpop.permute.xlu0 %86
    %vm89 = vcmask 572864
    %90 = vst.msk [vmem:[#allocation5] sm:$0xff] %vm89, %v87
    // Predicated region
    $region10: #{tpu_custom_call.1} parent=1 // pred_check
      _
    $region11: #{tpu_custom_call.1} parent=1 // pred_check_branch
      %92 = sbr.rel (0) target = $region13
    $region12: #{tpu_custom_call.1} parent=1 // pred_region
      %s94 = ssub.s32 128, 128
      %95 = vsyncadd [#allocation4], %s94
      %s97 = sshll.u32 [#allocation5], 4
      %s98 = int_to_ptr.vmem [resolvable:$true] %s97
      %100 = dma.vmem_to_hbm [thread:$0]  %s98, 128, %s1, [#allocation4]
    $region13: #{tpu_custom_call.1} parent=1 // pred_fallthru
      _
    // Predicated region
    $region14: #{tpu_custom_call.1} parent=1 // pred_check
      _
    $region15: #{tpu_custom_call.1} parent=1 // pred_check_branch
      %102 = sbr.rel (0) target = $region17
    $region16: #{tpu_custom_call.1} parent=1 // pred_region
      %103 = dma.done [#allocation4], 128
    $region17: #{tpu_custom_call.1} parent=1 // pred_fallthru
      _
    %104 = vsyncpa [#allocation3], 1
    %105 = vsyncpa [#allocation4], 1

</llo_original>
